<compile_context>
chip_gen: v7x
topology: tpu7x:2x2x1
jax: 0.10.0
libtpu: 0.0.40
codegen_flags: <defaults>
</compile_context>

<pallas_src>
import jax
import jax.numpy as jnp
from jax.experimental import pallas as pl
from jax.experimental.pallas import tpu as pltpu

LN_EPS = 1e-5


def _sln_prenorm_kernel(f_ref, sb_ref, o_ref):
    x = f_ref[0].astype(jnp.float32)               # (TN, F) compute in f32
    inv_f = jnp.float32(1.0 / x.shape[-1])

    sb = sb_ref[0]                                 # (8, F) packed f32 vectors
    a, b = sb[0:1, :], sb[1:2, :]                  # fused style scale / bias
    lnw, lnb = sb[2:3, :], sb[3:4, :]              # shared LayerNorm affine

    def norm_affine(v, scale, bias):
        # Two-pass statistics (variance on centered values): matches the
        # reference and avoids the E[x^2]-mu^2 cancellation/NaN issue.
        mu = jnp.sum(v, axis=-1, keepdims=True) * inv_f
        c = v - mu
        var = jnp.sum(c * c, axis=-1, keepdims=True) * inv_f
        return c * jax.lax.rsqrt(var + LN_EPS) * scale + bias

    # f' = (1+gamma)*LN(x) + beta  ==  x_hat * a + b   with
    #   a = (1+gamma)*ln_w,  b = (1+gamma)*ln_b + beta   (fused in the wrapper)
    f_mod = norm_affine(x, a, b)
    # out = fn(LN(f'));  fn == identity (see module TODO above)
    o_ref[0] = norm_affine(f_mod, lnw, lnb).astype(o_ref.dtype)


def _pick_tn(N, F, itemsize, B):
    """Token-tile size (rows per block).

    Targets ~1-4 MiB per f block (multiple of 8 rows, cap 2048); the
    double-buffered in+out blocks plus a few (tn, F) f32 compute temporaries
    stay well under the scoped VMEM limit on every generation (incl. v7x's
    64 MiB physical).  We never shrink the tile to make it divide N -- Pallas
    handles a partial last block and per-row LN stats isolate padded rows.
    """
    per_row = F * max(itemsize, 4)                 # f32 compute path dominates
    tn = (4 * 1024 * 1024) // per_row
    tn = max(8, min(2048, (tn // 8) * 8))
    if N <= tn:
        tn = N                                     # single full-extent block
    # v7x megacore: ensure >= 2 grid steps so both TensorCores get work.
    if B == 1 and N > 8 and pl.cdiv(N, tn) < 2:
        tn = min(N, max(8, ((((N + 1) // 2) + 7) // 8) * 8))
    return tn


def sln_prenorm(f, w, w_aff, b_aff, ln_w, ln_b, *, xla_fallback_bytes=0):
    """f: (B, N, F), w: (B, w_dim).
    w_aff: (w_dim, 2F) (already transposed vs. PyTorch), b_aff: (2F,),
    ln_w, ln_b: (F,).  F should be a multiple of 128 for lane-dense stores
    (pad in the caller otherwise)."""
    B, N, F = f.shape
    itemsize = jnp.dtype(f.dtype).itemsize

    # Hoisted affine projection: one well-shaped matmul in XLA instead of a
    # degenerate (1 x w_dim) MXU op inside every grid step.
    aff = jnp.dot(w.astype(jnp.float32), w_aff.astype(jnp.float32),
                  preferred_element_type=jnp.float32) + b_aff.astype(jnp.float32)
    gamma = aff[:, :F]                             # (B, F)
    beta = aff[:, F:]                              # (B, F)
    lnw = ln_w.astype(jnp.float32)
    lnb = ln_b.astype(jnp.float32)

    # Fuse first-LN affine with the style modulation (per perf review).
    one_plus_g = 1.0 + gamma
    a = one_plus_g * lnw                           # (B, F)
    b = one_plus_g * lnb + beta                    # (B, F)

    # Optional tiny-problem fallback: fixed pallas_call + per-step overhead can
    # exceed the actual work; let XLA fuse the elementwise expression instead.
    if xla_fallback_bytes and B * N * F * itemsize < xla_fallback_bytes:
        def _ln(v, scale, bias):
            mu = jnp.mean(v, axis=-1, keepdims=True)
            c = v - mu
            var = jnp.mean(c * c, axis=-1, keepdims=True)
            return c * jax.lax.rsqrt(var + LN_EPS) * scale + bias
        x = f.astype(jnp.float32)
        f_mod = _ln(x, a[:, None, :], b[:, None, :])
        return _ln(f_mod, lnw, lnb).astype(f.dtype)

    # Pack the per-batch / per-model vectors into one (B, 8, F) slab so the
    # kernel pulls a single (8, 128)-aligned block per batch instead of four
    # 1-sublane blocks:  row 0 = a, 1 = b, 2 = ln_w, 3 = ln_b, 4..7 = padding.
    sb = jnp.concatenate(
        [a[:, None, :], b[:, None, :],
         jnp.broadcast_to(lnw[None, None, :], (B, 1, F)),
         jnp.broadcast_to(lnb[None, None, :], (B, 1, F)),
         jnp.zeros((B, 4, F), jnp.float32)],
        axis=1)                                    # (B, 8, F)

    tn = _pick_tn(N, F, itemsize, B)
    grid = (B, pl.cdiv(N, tn))

    cost = pl.CostEstimate(
        flops=int(20 * B * N * F),
        transcendentals=int(2 * B * N),
        bytes_accessed=int(2 * B * N * F * itemsize + B * 8 * F * 4),
    )

    grid_spec = pl.GridSpec(
        grid=grid,
        in_specs=[
            pl.BlockSpec((1, tn, F), lambda bi, ni: (bi, ni, 0)),   # f token tile
            pl.BlockSpec((1, 8, F), lambda bi, ni: (bi, 0, 0)),     # packed vectors
        ],
        out_specs=pl.BlockSpec((1, tn, F), lambda bi, ni: (bi, ni, 0)),
    )

    return pl.pallas_call(
        _sln_prenorm_kernel,
        out_shape=jax.ShapeDtypeStruct((B, N, F), f.dtype),
        grid_spec=grid_spec,
        compiler_params=pltpu.CompilerParams(
            dimension_semantics=("parallel", "parallel"),
            vmem_limit_bytes=48 * 1024 * 1024,
        ),
        cost_estimate=cost,
    )(f, sb)


def _reference(f, w, w_aff, b_aff, ln_w, ln_b):
    def layernorm(v):
        mu = jnp.mean(v, axis=-1, keepdims=True)
        var = jnp.mean((v - mu) ** 2, axis=-1, keepdims=True)
        return (v - mu) / jnp.sqrt(var + LN_EPS) * ln_w + ln_b

    aff = w @ w_aff + b_aff
    F = ln_w.shape[0]
    gamma = aff[:, :F][:, None, :]
    beta = aff[:, F:][:, None, :]
    f_mod = (1.0 + gamma) * layernorm(f) + beta
    return layernorm(f_mod)


if __name__ == "__main__":
    # Small, lane-dense config: F is a multiple of 128.
    B, N, F, W_DIM = 2, 64, 128, 16

    key = jax.random.PRNGKey(0)
    kf, kw, kwa, kba, klw, klb = jax.random.split(key, 6)

    f = jax.random.normal(kf, (B, N, F), dtype=jnp.float32)
    w = jax.random.normal(kw, (B, W_DIM), dtype=jnp.float32)

    # nn.Linear(w_dim, 2F): weight (2F, w_dim) -> stored transposed as (w_dim, 2F)
    w_aff = jax.random.normal(kwa, (W_DIM, 2 * F), dtype=jnp.float32) * 0.1
    b_aff = jax.random.normal(kba, (2 * F,), dtype=jnp.float32) * 0.1
    # nn.LayerNorm(F) defaults (weight=1, bias=0) perturbed deterministically
    ln_w = 1.0 + 0.05 * jax.random.normal(klw, (F,), dtype=jnp.float32)
    ln_b = 0.05 * jax.random.normal(klb, (F,), dtype=jnp.float32)

    out = sln_prenorm(f, w, w_aff, b_aff, ln_w, ln_b)
    jax.block_until_ready(out)

    ref = _reference(f, w, w_aff, b_aff, ln_w, ln_b)
    assert out.shape == (B, N, F)
    err = float(jnp.max(jnp.abs(out - ref)))
    assert jnp.allclose(out, ref, atol=1e-4, rtol=1e-4), err

    print("KERNEL_OK")
</pallas_src>

<mosaic_0001>
module attributes {stable_mosaic.version = 11 : i64} {
  func.func @_sln_prenorm_kernel(%arg0: i32, %arg1: i32, %arg2: memref<1x64x128xf32, #tpu.memory_space<vmem>>, %arg3: memref<1x8x128xf32, #tpu.memory_space<vmem>>, %arg4: memref<1x64x128xf32, #tpu.memory_space<vmem>>) attributes {dimension_semantics = [#tpu.dimension_semantics<parallel>, #tpu.dimension_semantics<parallel>], iteration_bounds = array<i64: 2, 1>, scalar_prefetch = 0 : i64, scratch_operands = 0 : i64, tpu.core_type = #tpu.core_type<tc>, window_params = [{transform_indices = @transform_0, window_bounds = array<i64: 1, 64, 128>}, {transform_indices = @transform_1, window_bounds = array<i64: 1, 8, 128>}, {transform_indices = @transform_2, window_bounds = array<i64: 1, 64, 128>}]} {
    %c0 = arith.constant 0 : index
    %c0_0 = arith.constant 0 : index
    %c0_1 = arith.constant 0 : index
    %0 = vector.load %arg2[%c0, %c0_0, %c0_1] : memref<1x64x128xf32, #tpu.memory_space<vmem>>, vector<1x64x128xf32>
    %1 = vector.shape_cast %0 : vector<1x64x128xf32> to vector<64x128xf32>
    %c0_2 = arith.constant 0 : index
    %c0_3 = arith.constant 0 : index
    %c0_4 = arith.constant 0 : index
    %2 = vector.load %arg3[%c0_2, %c0_3, %c0_4] : memref<1x8x128xf32, #tpu.memory_space<vmem>>, vector<1x8x128xf32>
    %3 = vector.shape_cast %2 : vector<1x8x128xf32> to vector<8x128xf32>
    %4 = vector.extract_strided_slice %3 {offsets = [0, 0], sizes = [1, 128], strides = [1, 1]} : vector<8x128xf32> to vector<1x128xf32>
    %5 = vector.extract_strided_slice %3 {offsets = [1, 0], sizes = [1, 128], strides = [1, 1]} : vector<8x128xf32> to vector<1x128xf32>
    %6 = vector.extract_strided_slice %3 {offsets = [2, 0], sizes = [1, 128], strides = [1, 1]} : vector<8x128xf32> to vector<1x128xf32>
    %7 = vector.extract_strided_slice %3 {offsets = [3, 0], sizes = [1, 128], strides = [1, 1]} : vector<8x128xf32> to vector<1x128xf32>
    %cst = arith.constant dense<0.000000e+00> : vector<64xf32>
    %8 = vector.multi_reduction <add>, %1, %cst [1] : vector<64x128xf32> to vector<64xf32>
    %9 = vector.shape_cast %8 : vector<64xf32> to vector<64x1xf32>
    %cst_5 = arith.constant 7.812500e-03 : f32
    %10 = vector.broadcast %cst_5 : f32 to vector<64x1xf32>
    %11 = arith.mulf %9, %10 : vector<64x1xf32>
    %12 = vector.broadcast %11 : vector<64x1xf32> to vector<64x128xf32>
    %13 = arith.subf %1, %12 : vector<64x128xf32>
    %14 = arith.mulf %13, %13 : vector<64x128xf32>
    %cst_6 = arith.constant dense<0.000000e+00> : vector<64xf32>
    %15 = vector.multi_reduction <add>, %14, %cst_6 [1] : vector<64x128xf32> to vector<64xf32>
    %16 = vector.shape_cast %15 : vector<64xf32> to vector<64x1xf32>
    %cst_7 = arith.constant 7.812500e-03 : f32
    %17 = vector.broadcast %cst_7 : f32 to vector<64x1xf32>
    %18 = arith.mulf %16, %17 : vector<64x1xf32>
    %cst_8 = arith.constant 9.99999974E-6 : f32
    %19 = vector.broadcast %cst_8 : f32 to vector<64x1xf32>
    %20 = arith.addf %18, %19 : vector<64x1xf32>
    %21 = math.rsqrt %20 : vector<64x1xf32>
    %22 = vector.broadcast %21 : vector<64x1xf32> to vector<64x128xf32>
    %23 = arith.mulf %13, %22 : vector<64x128xf32>
    %24 = vector.broadcast %4 : vector<1x128xf32> to vector<64x128xf32>
    %25 = arith.mulf %23, %24 : vector<64x128xf32>
    %26 = vector.broadcast %5 : vector<1x128xf32> to vector<64x128xf32>
    %27 = arith.addf %25, %26 : vector<64x128xf32>
    %cst_9 = arith.constant dense<0.000000e+00> : vector<64xf32>
    %28 = vector.multi_reduction <add>, %27, %cst_9 [1] : vector<64x128xf32> to vector<64xf32>
    %29 = vector.shape_cast %28 : vector<64xf32> to vector<64x1xf32>
    %cst_10 = arith.constant 7.812500e-03 : f32
    %30 = vector.broadcast %cst_10 : f32 to vector<64x1xf32>
    %31 = arith.mulf %29, %30 : vector<64x1xf32>
    %32 = vector.broadcast %31 : vector<64x1xf32> to vector<64x128xf32>
    %33 = arith.subf %27, %32 : vector<64x128xf32>
    %34 = arith.mulf %33, %33 : vector<64x128xf32>
    %cst_11 = arith.constant dense<0.000000e+00> : vector<64xf32>
    %35 = vector.multi_reduction <add>, %34, %cst_11 [1] : vector<64x128xf32> to vector<64xf32>
    %36 = vector.shape_cast %35 : vector<64xf32> to vector<64x1xf32>
    %cst_12 = arith.constant 7.812500e-03 : f32
    %37 = vector.broadcast %cst_12 : f32 to vector<64x1xf32>
    %38 = arith.mulf %36, %37 : vector<64x1xf32>
    %cst_13 = arith.constant 9.99999974E-6 : f32
    %39 = vector.broadcast %cst_13 : f32 to vector<64x1xf32>
    %40 = arith.addf %38, %39 : vector<64x1xf32>
    %41 = math.rsqrt %40 : vector<64x1xf32>
    %42 = vector.broadcast %41 : vector<64x1xf32> to vector<64x128xf32>
    %43 = arith.mulf %33, %42 : vector<64x128xf32>
    %44 = vector.broadcast %6 : vector<1x128xf32> to vector<64x128xf32>
    %45 = arith.mulf %43, %44 : vector<64x128xf32>
    %46 = vector.broadcast %7 : vector<1x128xf32> to vector<64x128xf32>
    %47 = arith.addf %45, %46 : vector<64x128xf32>
    %c0_14 = arith.constant 0 : index
    %c0_15 = arith.constant 0 : index
    %c0_16 = arith.constant 0 : index
    %48 = vector.load %arg4[%c0_14, %c0_15, %c0_16] : memref<1x64x128xf32, #tpu.memory_space<vmem>>, vector<1x64x128xf32>
    %49 = vector.shape_cast %48 : vector<1x64x128xf32> to vector<64x128xf32>
    %50 = vector.shape_cast %47 : vector<64x128xf32> to vector<1x64x128xf32>
    tpu.vector_store %arg4[%c0_14, %c0_15, %c0_16], %50 {strides = array<i32>} : memref<1x64x128xf32, #tpu.memory_space<vmem>>, vector<1x64x128xf32>,
    return
  }
  func.func @transform_0(%arg0: i32, %arg1: i32) -> (i32, i32, i32) {
    %c0_i32 = arith.constant 0 : i32
    %c0_i32_0 = arith.constant 0 : i32
    return %arg0, %arg1, %c0_i32 : i32, i32, i32
  }
  func.func @transform_1(%arg0: i32, %arg1: i32) -> (i32, i32, i32) {
    %c0_i32 = arith.constant 0 : i32
    %c0_i32_0 = arith.constant 0 : i32
    %c0_i32_1 = arith.constant 0 : i32
    return %arg0, %c0_i32, %c0_i32_0 : i32, i32, i32
  }
  func.func @transform_2(%arg0: i32, %arg1: i32) -> (i32, i32, i32) {
    %c0_i32 = arith.constant 0 : i32
    %c0_i32_0 = arith.constant 0 : i32
    return %arg0, %arg1, %c0_i32 : i32, i32, i32
  }
}

</mosaic_0001>

<llo_original>
// kernel: tpu_custom_call.1
$region0: #{tpu_custom_call.1}
  #allocation0 [shape = 'u32[]', space=smem, size = 0x4, offset = 0x4, fixed_abs, tag = 'smem constant byte address 0x4 - core index']
  #allocation1 [shape = 'u32[144,128]{1,0:T(1,128)}', space=vmem, size = 0x12000, scoped, tag = 'internal scratch']
  %s0 = inlined_call_operand.hbm [shape: f32[2,64,128], index: 0, kind: input, shape index: {}]
  %s1 = inlined_call_operand.hbm [shape: f32[2,8,128], index: 1, kind: input, shape index: {}]
  %s2 = inlined_call_operand.hbm [shape: f32[2,64,128], index: 2, kind: output, shape index: {}]
  %s3 = sld [smem:[#allocation0]]
  $region49: #{tpu_custom_call.1} parent=0
    _
  %s5 = ssub.s32 1, %s3
  %s6 = scalar_select 0, %s5, %s3
  $region1: #{tpu_custom_call.1} parent=0
    #allocation2 [shape = 'u8[65536]{0}', space=vmem, size = 0x10000, scoped, tag = 'input window, operand 0']
    #allocation3 [shape = 's32[2]{0}', space=sflag, size = 0x8, scoped, tag = 'scoped memory for tpu_custom_call.1']
    #allocation4 [shape = 's32[2]{0}', space=sflag, size = 0x8, scoped, tag = 'scoped memory for tpu_custom_call.1']
    #allocation5 [shape = 'u8[8192]{0}', space=vmem, size = 0x2000, scoped, tag = 'input window, operand 1']
    #allocation6 [shape = 's32[2]{0}', space=sflag, size = 0x8, scoped, tag = 'scoped memory for tpu_custom_call.1']
    #allocation7 [shape = 'u8[65536]{0}', space=vmem, size = 0x10000, scoped, tag = 'output window, operand 0']
    %7 = vsyncpa [#allocation3], 0
    %s8 = scalar_lea.sflag [#allocation3], 1
    %9 = vsyncpa %s8, 0
    %10 = vsyncpa [#allocation6], 0
    %s11 = scalar_lea.sflag [#allocation6], 1
    %12 = vsyncpa %s11, 0
    %13 = vsyncpa [#allocation4], 0
    %s14 = scalar_lea.sflag [#allocation4], 1
    %15 = vsyncpa %s14, 0
    loop: start=0, step=1, limit=4
    $region2: #{tpu_custom_call.1} parent=1 // loop_pre_header
      _
    $region3: #{tpu_custom_call.1} parent=1 // loop_header
      %s17 = sphi 0, %s21
      %p18 = scmp.ge.s32.totalorder %s17, 4
      %s24 = sphi 0, %s36
      %s25 = sphi 0, %s32
      %s26 = sphi 0, %s24
      %s27 = sphi 0, %s25
      %s28 = sphi 0, %s26
      %s29 = sphi 0, %s27
      %s41 = sphi 0, %s43
      %s44 = sphi 0, %s41
      %s45 = sphi 0, %s44
      %s61 = sphi 0, %s45
      %s67 = sphi 0, %s69
      %s70 = sphi 0, %s67
      %s71 = sphi 0, %s70
      %s87 = sphi 0, %s71
      %s95 = sphi 0, %s97
      %s98 = sphi 0, %s95
      %s99 = sphi 0, %s98
      %s115 = sphi 0, %s99
    $region4: #{tpu_custom_call.1} parent=1 // loop_header_branch
      %20 = sbr.rel (%p18) target = $region8
    $region5: #{tpu_custom_call.1} parent=1 // loop_body
      %s22 = ssub.s32 %s17, 1
      %s23 = ssub.s32 %s17, 2
      %s30 = sadd.s32 1, %s25
      %p31 = scmp.ge.s32.totalorder %s30, 1
      %s32 = scalar_select %p31, 0, %s30
      %s33 = sadd.s32 1, %s24
      %s34 = scalar_select %p31, %s33, %s24
      %p35 = scmp.ge.s32.totalorder %s34, 2
      %s36 = scalar_select %p35, 0, %s34
      %s37 = ssub.s32 %s24, %s36
      %s38 = ssub.s32 %s25, %s32
      %s39 = sor.u32 %s37, %s38
      %p40 = scmp.eq.s32.totalorder %s39, 0
      %s42 = sadd.s32 %s41, 1
      %s43 = scalar_select %p40, %s41, %s42
      %p46 = pneg %p40
      %p47 = scmp.eq.s32.totalorder %s17, 1
      %p48 = por %p46, %p47
      %p49 = scmp.ne.s32.totalorder %s41, %s44
      %p50 = scmp.eq.s32.totalorder %s17, 0
      %p51 = por %p49, %p50
      %p52 = scmp.ne.s32.totalorder %s41, %s44
      %p53 = scmp.eq.s32.totalorder %s22, 1
      %p54 = por %p52, %p53
      %p55 = scmp.ne.s32.totalorder %s44, %s45
      %p56 = scmp.eq.s32.totalorder %s22, 0
      %p57 = por %p55, %p56
      %p58 = scmp.ne.s32.totalorder %s44, %s45
      %p59 = scmp.eq.s32.totalorder %s23, 1
      %p60 = por %p58, %p59
      %p62 = scmp.ne.s32.totalorder %s45, %s61
      %p63 = scmp.eq.s32.totalorder %s23, 0
      %p64 = por %p62, %p63
      %s65 = ssub.s32 %s24, %s36
      %p66 = scmp.eq.s32.totalorder %s65, 0
      %s68 = sadd.s32 %s67, 1
      %s69 = scalar_select %p66, %s67, %s68
      %p72 = pneg %p66
      %p73 = scmp.eq.s32.totalorder %s17, 1
      %p74 = por %p72, %p73
      %p75 = scmp.ne.s32.totalorder %s67, %s70
      %p76 = scmp.eq.s32.totalorder %s17, 0
      %p77 = por %p75, %p76
      %p78 = scmp.ne.s32.totalorder %s67, %s70
      %p79 = scmp.eq.s32.totalorder %s22, 1
      %p80 = por %p78, %p79
      %p81 = scmp.ne.s32.totalorder %s70, %s71
      %p82 = scmp.eq.s32.totalorder %s22, 0
      %p83 = por %p81, %p82
      %p84 = scmp.ne.s32.totalorder %s70, %s71
      %p85 = scmp.eq.s32.totalorder %s23, 1
      %p86 = por %p84, %p85
      %p88 = scmp.ne.s32.totalorder %s71, %s87
      %p89 = scmp.eq.s32.totalorder %s23, 0
      %p90 = por %p88, %p89
      %s91 = ssub.s32 %s24, %s36
      %s92 = ssub.s32 %s25, %s32
      %s93 = sor.u32 %s91, %s92
      %p94 = scmp.eq.s32.totalorder %s93, 0
      %s96 = sadd.s32 %s95, 1
      %s97 = scalar_select %p94, %s95, %s96
      %p100 = pneg %p94
      %p101 = scmp.eq.s32.totalorder %s17, 1
      %p102 = por %p100, %p101
      %p103 = scmp.ne.s32.totalorder %s95, %s98
      %p104 = scmp.eq.s32.totalorder %s17, 0
      %p105 = por %p103, %p104
      %p106 = scmp.ne.s32.totalorder %s95, %s98
      %p107 = scmp.eq.s32.totalorder %s22, 1
      %p108 = por %p106, %p107
      %p109 = scmp.ne.s32.totalorder %s98, %s99
      %p110 = scmp.eq.s32.totalorder %s22, 0
      %p111 = por %p109, %p110
      %p112 = scmp.ne.s32.totalorder %s98, %s99
      %p113 = scmp.eq.s32.totalorder %s23, 1
      %p114 = por %p112, %p113
      %p116 = scmp.ne.s32.totalorder %s99, %s115
      %p117 = scmp.eq.s32.totalorder %s23, 0
      %p118 = por %p116, %p117
      %p119 = scmp.le.s32.totalorder 1, %s17
      %p120 = scmp.lt.s32.totalorder %s17, 3
      %p121 = pnand %p119, %p120
      %p122 = pneg %p121
      // Predicated region
      $region9: #{tpu_custom_call.1} parent=5 // pred_check
        _
      $region10: #{tpu_custom_call.1} parent=5 // pred_check_branch
        %124 = sbr.rel (%p121) target = $region12
      $region11: #{tpu_custom_call.1} parent=5 // pred_region
        %s125 = ssub.s32 %s17, 1
      $region12: #{tpu_custom_call.1} parent=5 // pred_fallthru
        _
      %p126 = scmp.lt.s32.totalorder %s17, 2
      // Predicated region
      $region13: #{tpu_custom_call.1} parent=5 // pred_check
        %p127 = pneg %p126
      $region14: #{tpu_custom_call.1} parent=5 // pred_check_branch
        %129 = sbr.rel (%p127) target = $region16
      $region15: #{tpu_custom_call.1} parent=5 // pred_region
        // Predicated region
        $region17: #{tpu_custom_call.1} parent=15 // pred_check
          %p130 = pneg %p51
        $region18: #{tpu_custom_call.1} parent=15 // pred_check_branch
          %132 = sbr.rel (%p130) target = $region20
        $region19: #{tpu_custom_call.1} parent=15 // pred_region
          %s133 = sand.u32 %s41, 1
          %s134 = scalar_lea.sflag [#allocation3], %s133
          %s135 = sand.u32 %s41, 1
          %s136 = smul.addr %s135, 64
          %s137 = scalar_lea.vmem [#allocation2], %s136
          %s138 = smul.u32 8, %s25
          %s140 = ssub.s32 1024, 1024
          %141 = vsyncadd %s134, %s140
          %s142 = smul.addr %s24, 8
          %s143 = sadd.s32 %s138, %s142
          %s144 = smul.addr %s143, 128
          %s145 = scalar_lea.hbm %s0, %s144
          %s146 = sshll.u32 %s137, 4
          %s147 = int_to_ptr.vmem [resolvable:$true] %s146
          %152 = dma.hbm_to_vmem [thread:$0]  %s145, 1024, %s147, %s134, 128, 128, 8
        $region20: #{tpu_custom_call.1} parent=15 // pred_fallthru
          _
        // Predicated region
        $region21: #{tpu_custom_call.1} parent=15 // pred_check
          %p153 = pneg %p77
        $region22: #{tpu_custom_call.1} parent=15 // pred_check_branch
          %155 = sbr.rel (%p153) target = $region24
        $region23: #{tpu_custom_call.1} parent=15 // pred_region
          %s156 = sand.u32 %s67, 1
          %s157 = scalar_lea.sflag [#allocation6], %s156
          %s158 = sand.u32 %s67, 1
          %s159 = smul.addr %s158, 8
          %s160 = scalar_lea.vmem [#allocation5], %s159
          %s162 = ssub.s32 128, 128
          %163 = vsyncadd %s157, %s162
          %s164 = smul.addr %s24, 128
          %s165 = scalar_lea.hbm %s1, %s164
          %s167 = sshll.u32 %s160, 4
          %s168 = int_to_ptr.vmem [resolvable:$true] %s167
          %170 = dma.hbm_to_vmem [thread:$0]  %s165, 128, %s168, %s157
        $region24: #{tpu_custom_call.1} parent=15 // pred_fallthru
          _
      $region16: #{tpu_custom_call.1} parent=5 // pred_fallthru
        _
      %p171 = scmp.le.s32.totalorder 1, %s17
      %p172 = scmp.lt.s32.totalorder %s17, 3
      %p173 = pnand %p171, %p172
      %p174 = pneg %p173
      // Predicated region
      $region25: #{tpu_custom_call.1} parent=5 // pred_check
        _
      $region26: #{tpu_custom_call.1} parent=5 // pred_check_branch
        %176 = sbr.rel (%p173) target = $region28
      $region27: #{tpu_custom_call.1} parent=5 // pred_region
        %s177 = ssub.s32 %s17, 1
        %s178 = sand.u32 %s44, 1
        %s179 = scalar_lea.sflag [#allocation3], %s178
        %s180 = sand.u32 %s44, 1
        %s181 = smul.addr %s180, 64
        %s182 = scalar_lea.vmem [#allocation2], %s181
        // Predicated region
        $region29: #{tpu_custom_call.1} parent=27 // pred_check
          %p183 = pneg %p57
        $region30: #{tpu_custom_call.1} parent=27 // pred_check_branch
          %185 = sbr.rel (%p183) target = $region32
        $region31: #{tpu_custom_call.1} parent=27 // pred_region
          %186 = dma.done %s179, 1024
        $region32: #{tpu_custom_call.1} parent=27 // pred_fallthru
          _
        %s187 = sand.u32 %s70, 1
        %s188 = scalar_lea.sflag [#allocation6], %s187
        %s189 = sand.u32 %s70, 1
        %s190 = smul.addr %s189, 8
        %s191 = scalar_lea.vmem [#allocation5], %s190
        // Predicated region
        $region33: #{tpu_custom_call.1} parent=27 // pred_check
          %p192 = pneg %p83
        $region34: #{tpu_custom_call.1} parent=27 // pred_check_branch
          %194 = sbr.rel (%p192) target = $region36
        $region35: #{tpu_custom_call.1} parent=27 // pred_region
          %195 = dma.done %s188, 128
        $region36: #{tpu_custom_call.1} parent=27 // pred_fallthru
          _
        %s196 = sand.u32 %s44, 1
        %s197 = scalar_lea.sflag [#allocation3], %s196
        %s198 = sand.u32 %s44, 1
        %s199 = smul.addr %s198, 64
        %s200 = scalar_lea.vmem [#allocation2], %s199
        %p201 = pneg %p57
        %p202 = pneg %p54
        %s203 = sand.u32 %s70, 1
        %s204 = scalar_lea.sflag [#allocation6], %s203
        %s205 = sand.u32 %s70, 1
        %s206 = smul.addr %s205, 8
        %s207 = scalar_lea.vmem [#allocation5], %s206
        %p208 = pneg %p83
        %p209 = pneg %p80
        %p210 = pneg %p111
        %p211 = pneg %p108
        %s212 = sand.u32 %s98, 1
        %s213 = scalar_lea.sflag [#allocation4], %s212
        %s214 = sand.u32 %s98, 1
        %s215 = smul.addr %s214, 64
        %s216 = scalar_lea.vmem [#allocation7], %s215
        %s217 = smul.u32 8, %s27
        %s218 = smul.u32 8, %s27
        %v219 = vld [vmem:[%s182] sm:$0xff]
        %v220 = vld [vmem:[%s182 + $0x8] sm:$0xff]
        %v221 = vld [vmem:[%s182 + $0x10] sm:$0xff]
        %v222 = vld [vmem:[%s182 + $0x18] sm:$0xff]
        %v223 = vld [vmem:[%s182 + $0x20] sm:$0xff]
        %v224 = vld [vmem:[%s182 + $0x28] sm:$0xff]
        %v225 = vld [vmem:[%s182 + $0x30] sm:$0xff]
        %v226 = vld [vmem:[%s182 + $0x38] sm:$0xff]
        %v227 = vld [vmem:[%s191] sm:$0xff]
        %228 = vadd.xlane.f32.xlu0 %v219
        %v229 = vpop.xlane.xlu0 %228
        %230 = vadd.xlane.f32.xlu0 %v220
        %v231 = vpop.xlane.xlu0 %230
        %232 = vadd.xlane.f32.xlu0 %v221
        %v233 = vpop.xlane.xlu0 %232
        %234 = vadd.xlane.f32.xlu0 %v222
        %v235 = vpop.xlane.xlu0 %234
        %236 = vadd.xlane.f32.xlu0 %v223
        %v237 = vpop.xlane.xlu0 %236
        %238 = vadd.xlane.f32.xlu0 %v224
        %v239 = vpop.xlane.xlu0 %238
        %240 = vadd.xlane.f32.xlu0 %v225
        %v241 = vpop.xlane.xlu0 %240
        %242 = vadd.xlane.f32.xlu0 %v226
        %v243 = vpop.xlane.xlu0 %242
        %v244 = vmul.f32 %v229, 0.0078125
        %v245 = vmul.f32 %v231, 0.0078125
        %v246 = vmul.f32 %v233, 0.0078125
        %v247 = vmul.f32 %v235, 0.0078125
        %v248 = vmul.f32 %v237, 0.0078125
        %v249 = vmul.f32 %v239, 0.0078125
        %v250 = vmul.f32 %v241, 0.0078125
        %v251 = vmul.f32 %v243, 0.0078125
        %v252 = vsub.f32 %v219, %v244
        %v253 = vsub.f32 %v220, %v245
        %v254 = vsub.f32 %v221, %v246
        %v255 = vsub.f32 %v222, %v247
        %v256 = vsub.f32 %v223, %v248
        %v257 = vsub.f32 %v224, %v249
        %v258 = vsub.f32 %v225, %v250
        %v259 = vsub.f32 %v226, %v251
        %v260 = vmul.f32 %v252, %v252
        %v261 = vmul.f32 %v253, %v253
        %v262 = vmul.f32 %v254, %v254
        %v263 = vmul.f32 %v255, %v255
        %v264 = vmul.f32 %v256, %v256
        %v265 = vmul.f32 %v257, %v257
        %v266 = vmul.f32 %v258, %v258
        %v267 = vmul.f32 %v259, %v259
        %268 = vadd.xlane.f32.xlu0 %v260
        %v269 = vpop.xlane.xlu0 %268
        %270 = vadd.xlane.f32.xlu0 %v261
        %v271 = vpop.xlane.xlu0 %270
        %272 = vadd.xlane.f32.xlu0 %v262
        %v273 = vpop.xlane.xlu0 %272
        %274 = vadd.xlane.f32.xlu0 %v263
        %v275 = vpop.xlane.xlu0 %274
        %276 = vadd.xlane.f32.xlu0 %v264
        %v277 = vpop.xlane.xlu0 %276
        %278 = vadd.xlane.f32.xlu0 %v265
        %v279 = vpop.xlane.xlu0 %278
        %280 = vadd.xlane.f32.xlu0 %v266
        %v281 = vpop.xlane.xlu0 %280
        %282 = vadd.xlane.f32.xlu0 %v267
        %v283 = vpop.xlane.xlu0 %282
        %v284 = vmul.f32 %v269, 0.0078125
        %v285 = vmul.f32 %v271, 0.0078125
        %v286 = vmul.f32 %v273, 0.0078125
        %v287 = vmul.f32 %v275, 0.0078125
        %v288 = vmul.f32 %v277, 0.0078125
        %v289 = vmul.f32 %v279, 0.0078125
        %v290 = vmul.f32 %v281, 0.0078125
        %v291 = vmul.f32 %v283, 0.0078125
        %v292 = vadd.f32 %v284, 1e-05
        %v293 = vadd.f32 %v285, 1e-05
        %v294 = vadd.f32 %v286, 1e-05
        %v295 = vadd.f32 %v287, 1e-05
        %v296 = vadd.f32 %v288, 1e-05
        %v297 = vadd.f32 %v289, 1e-05
        %v298 = vadd.f32 %v290, 1e-05
        %v299 = vadd.f32 %v291, 1e-05
        %v300 = vrsqrt.pop %v292
        %v301 = vrsqrt.pop %v293
        %v302 = vrsqrt.pop %v294
        %v303 = vrsqrt.pop %v295
        %v304 = vrsqrt.pop %v296
        %v305 = vrsqrt.pop %v297
        %v306 = vrsqrt.pop %v298
        %v307 = vrsqrt.pop %v299
        %v308 = vmul.f32 %v252, %v300
        %v309 = vmul.f32 %v253, %v301
        %v310 = vmul.f32 %v254, %v302
        %v311 = vmul.f32 %v255, %v303
        %v312 = vmul.f32 %v256, %v304
        %v313 = vmul.f32 %v257, %v305
        %v314 = vmul.f32 %v258, %v306
        %v315 = vmul.f32 %v259, %v307
        %v316 = vlaneseq
        %v317 = vshrl.u32 %v316, 7
        %v318 = vsub.s32 0, %v317
        %v319 = vrot.slane %v227, %v318
        %v320 = vmul.f32 %v308, %v319
        %v321 = vmul.f32 %v309, %v319
        %v322 = vmul.f32 %v310, %v319
        %v323 = vmul.f32 %v311, %v319
        %v324 = vmul.f32 %v312, %v319
        %v325 = vmul.f32 %v313, %v319
        %v326 = vmul.f32 %v314, %v319
        %v327 = vmul.f32 %v315, %v319
        %v328 = vlaneseq
        %v329 = vshrl.u32 %v328, 7
        %v330 = vsub.s32 1, %v329
        %v331 = vrot.slane %v227, %v330
        %v332 = vadd.f32 %v320, %v331
        %v333 = vadd.f32 %v321, %v331
        %v334 = vadd.f32 %v322, %v331
        %v335 = vadd.f32 %v323, %v331
        %v336 = vadd.f32 %v324, %v331
        %v337 = vadd.f32 %v325, %v331
        %v338 = vadd.f32 %v326, %v331
        %v339 = vadd.f32 %v327, %v331
        %340 = vadd.xlane.f32.xlu0 %v332
        %v341 = vpop.xlane.xlu0 %340
        %342 = vadd.xlane.f32.xlu0 %v333
        %v343 = vpop.xlane.xlu0 %342
        %344 = vadd.xlane.f32.xlu0 %v334
        %v345 = vpop.xlane.xlu0 %344
        %346 = vadd.xlane.f32.xlu0 %v335
        %v347 = vpop.xlane.xlu0 %346
        %348 = vadd.xlane.f32.xlu0 %v336
        %v349 = vpop.xlane.xlu0 %348
        %350 = vadd.xlane.f32.xlu0 %v337
        %v351 = vpop.xlane.xlu0 %350
        %352 = vadd.xlane.f32.xlu0 %v338
        %v353 = vpop.xlane.xlu0 %352
        %354 = vadd.xlane.f32.xlu0 %v339
        %v355 = vpop.xlane.xlu0 %354
        %v356 = vmul.f32 %v341, 0.0078125
        %v357 = vmul.f32 %v343, 0.0078125
        %v358 = vmul.f32 %v345, 0.0078125
        %v359 = vmul.f32 %v347, 0.0078125
        %v360 = vmul.f32 %v349, 0.0078125
        %v361 = vmul.f32 %v351, 0.0078125
        %v362 = vmul.f32 %v353, 0.0078125
        %v363 = vmul.f32 %v355, 0.0078125
        %v364 = vsub.f32 %v332, %v356
        %v365 = vsub.f32 %v333, %v357
        %v366 = vsub.f32 %v334, %v358
        %v367 = vsub.f32 %v335, %v359
        %v368 = vsub.f32 %v336, %v360
        %v369 = vsub.f32 %v337, %v361
        %v370 = vsub.f32 %v338, %v362
        %v371 = vsub.f32 %v339, %v363
        %v372 = vmul.f32 %v364, %v364
        %v373 = vmul.f32 %v365, %v365
        %v374 = vmul.f32 %v366, %v366
        %v375 = vmul.f32 %v367, %v367
        %v376 = vmul.f32 %v368, %v368
        %v377 = vmul.f32 %v369, %v369
        %v378 = vmul.f32 %v370, %v370
        %v379 = vmul.f32 %v371, %v371
        %380 = vadd.xlane.f32.xlu0 %v372
        %v381 = vpop.xlane.xlu0 %380
        %382 = vadd.xlane.f32.xlu0 %v373
        %v383 = vpop.xlane.xlu0 %382
        %384 = vadd.xlane.f32.xlu0 %v374
        %v385 = vpop.xlane.xlu0 %384
        %386 = vadd.xlane.f32.xlu0 %v375
        %v387 = vpop.xlane.xlu0 %386
        %388 = vadd.xlane.f32.xlu0 %v376
        %v389 = vpop.xlane.xlu0 %388
        %390 = vadd.xlane.f32.xlu0 %v377
        %v391 = vpop.xlane.xlu0 %390
        %392 = vadd.xlane.f32.xlu0 %v378
        %v393 = vpop.xlane.xlu0 %392
        %394 = vadd.xlane.f32.xlu0 %v379
        %v395 = vpop.xlane.xlu0 %394
        %v396 = vmul.f32 %v381, 0.0078125
        %v397 = vmul.f32 %v383, 0.0078125
        %v398 = vmul.f32 %v385, 0.0078125
        %v399 = vmul.f32 %v387, 0.0078125
        %v400 = vmul.f32 %v389, 0.0078125
        %v401 = vmul.f32 %v391, 0.0078125
        %v402 = vmul.f32 %v393, 0.0078125
        %v403 = vmul.f32 %v395, 0.0078125
        %v404 = vadd.f32 %v396, 1e-05
        %v405 = vadd.f32 %v397, 1e-05
        %v406 = vadd.f32 %v398, 1e-05
        %v407 = vadd.f32 %v399, 1e-05
        %v408 = vadd.f32 %v400, 1e-05
        %v409 = vadd.f32 %v401, 1e-05
        %v410 = vadd.f32 %v402, 1e-05
        %v411 = vadd.f32 %v403, 1e-05
        %v412 = vrsqrt.pop %v404
        %v413 = vrsqrt.pop %v405
        %v414 = vrsqrt.pop %v406
        %v415 = vrsqrt.pop %v407
        %v416 = vrsqrt.pop %v408
        %v417 = vrsqrt.pop %v409
        %v418 = vrsqrt.pop %v410
        %v419 = vrsqrt.pop %v411
        %v420 = vmul.f32 %v364, %v412
        %v421 = vmul.f32 %v365, %v413
        %v422 = vmul.f32 %v366, %v414
        %v423 = vmul.f32 %v367, %v415
        %v424 = vmul.f32 %v368, %v416
        %v425 = vmul.f32 %v369, %v417
        %v426 = vmul.f32 %v370, %v418
        %v427 = vmul.f32 %v371, %v419
        %v428 = vlaneseq
        %v429 = vshrl.u32 %v428, 7
        %v430 = vsub.s32 2, %v429
        %v431 = vrot.slane %v227, %v430
        %v432 = vmul.f32 %v420, %v431
        %v433 = vmul.f32 %v421, %v431
        %v434 = vmul.f32 %v422, %v431
        %v435 = vmul.f32 %v423, %v431
        %v436 = vmul.f32 %v424, %v431
        %v437 = vmul.f32 %v425, %v431
        %v438 = vmul.f32 %v426, %v431
        %v439 = vmul.f32 %v427, %v431
        %v440 = vlaneseq
        %v441 = vshrl.u32 %v440, 7
        %v442 = vsub.s32 3, %v441
        %v443 = vrot.slane %v227, %v442
        %v444 = vadd.f32 %v432, %v443
        %v445 = vadd.f32 %v433, %v443
        %v446 = vadd.f32 %v434, %v443
        %v447 = vadd.f32 %v435, %v443
        %v448 = vadd.f32 %v436, %v443
        %v449 = vadd.f32 %v437, %v443
        %v450 = vadd.f32 %v438, %v443
        %v451 = vadd.f32 %v439, %v443
        %452 = vst [vmem:[%s216] sm:$0xff] %v444
        %453 = vst [vmem:[%s216 + $0x8] sm:$0xff] %v445
        %454 = vst [vmem:[%s216 + $0x10] sm:$0xff] %v446
        %455 = vst [vmem:[%s216 + $0x18] sm:$0xff] %v447
        %456 = vst [vmem:[%s216 + $0x20] sm:$0xff] %v448
        %457 = vst [vmem:[%s216 + $0x28] sm:$0xff] %v449
        %458 = vst [vmem:[%s216 + $0x30] sm:$0xff] %v450
        %459 = vst [vmem:[%s216 + $0x38] sm:$0xff] %v451
        %s460 = sand.u32 %s98, 1
        %s461 = scalar_lea.sflag [#allocation4], %s460
        %s462 = sand.u32 %s98, 1
        %s463 = smul.addr %s462, 64
        %s464 = scalar_lea.vmem [#allocation7], %s463
        // Predicated region
        $region37: #{tpu_custom_call.1} parent=27 // pred_check
          %p465 = pneg %p108
        $region38: #{tpu_custom_call.1} parent=27 // pred_check_branch
          %467 = sbr.rel (%p465) target = $region40
        $region39: #{tpu_custom_call.1} parent=27 // pred_region
          %s468 = smul.u32 8, %s27
          %s470 = ssub.s32 1024, 1024
          %471 = vsyncadd %s461, %s470
          %s472 = smul.addr %s26, 8
          %s473 = sadd.s32 %s468, %s472
          %s474 = smul.addr %s473, 128
          %s475 = scalar_lea.hbm %s2, %s474
          %s476 = sshll.u32 %s464, 4
          %s477 = int_to_ptr.vmem [resolvable:$true] %s476
          %482 = dma.vmem_to_hbm [thread:$0]  %s477, 1024, %s475, %s461, 128, 128, 8
        $region40: #{tpu_custom_call.1} parent=27 // pred_fallthru
          _
      $region28: #{tpu_custom_call.1} parent=5 // pred_fallthru
        _
      %p483 = scmp.le.s32.totalorder 2, %s17
      // Predicated region
      $region41: #{tpu_custom_call.1} parent=5 // pred_check
        %p484 = pneg %p483
      $region42: #{tpu_custom_call.1} parent=5 // pred_check_branch
        %486 = sbr.rel (%p484) target = $region44
      $region43: #{tpu_custom_call.1} parent=5 // pred_region
        %s487 = ssub.s32 %s17, 2
        // Predicated region
        $region45: #{tpu_custom_call.1} parent=43 // pred_check
          %p488 = pneg %p114
        $region46: #{tpu_custom_call.1} parent=43 // pred_check_branch
          %490 = sbr.rel (%p488) target = $region48
        $region47: #{tpu_custom_call.1} parent=43 // pred_region
          %s491 = sand.u32 %s99, 1
          %s492 = scalar_lea.sflag [#allocation4], %s491
          %s493 = sand.u32 %s99, 1
          %s494 = smul.addr %s493, 64
          %s495 = scalar_lea.vmem [#allocation7], %s494
          %496 = dma.done %s492, 1024
        $region48: #{tpu_custom_call.1} parent=43 // pred_fallthru
          _
      $region44: #{tpu_custom_call.1} parent=5 // pred_fallthru
        _
    $region6: #{tpu_custom_call.1} parent=1 // loop_footer
      %s21 = sadd.s32 1, %s17
    $region7: #{tpu_custom_call.1} parent=1 // loop_footer_branch
      %16 = sbr.rel target = $region3
    $region8: #{tpu_custom_call.1} parent=1 // loop_exit
      _
    %497 = vsyncpa [#allocation3], 1
    %s498 = scalar_lea.sflag [#allocation3], 1
    %499 = vsyncpa %s498, 1
    %500 = vsyncpa [#allocation6], 1
    %s501 = scalar_lea.sflag [#allocation6], 1
    %502 = vsyncpa %s501, 1
    %503 = vsyncpa [#allocation4], 1
    %s504 = scalar_lea.sflag [#allocation4], 1
    %505 = vsyncpa %s504, 1

</llo_original>
